<compile_context>
chip_gen: v7x
topology: tpu7x:2x2x1
jax: 0.10.0
libtpu: 0.0.40
codegen_flags: <defaults>
</compile_context>

<pallas_src>
import jax
import jax.numpy as jnp
from jax.experimental import pallas as pl
from jax.experimental.pallas import tpu as pltpu

HIDDEN = 64            # per-head hidden width (matches the PyTorch module)
FUSED_H = 2 * HIDDEN   # 128: actor + critic hidden stacked -> exact vreg / MXU width


def _round_up(x, m):
    return (x + m - 1) // m * m


# ---------------------------------------------------------------------------
# Kernel
# ---------------------------------------------------------------------------

def actor_critic_kernel(xT_ref, w1_ref, b1_ref, w2_ref, b2_ref, w3_ref, b3_ref, outT_ref):
    xT = xT_ref[...]                                              # [num_inputs, TB] bf16
    # layer 1: [128, num_inputs] @ [num_inputs, TB] -> [128, TB], f32 accumulate
    h = jnp.tanh(
        jnp.dot(w1_ref[...], xT, preferred_element_type=jnp.float32) + b1_ref[...]
    )
    # layer 2: block-diag(aw2, cw2) [128, 128] @ [128, TB]
    h = jnp.tanh(
        jnp.dot(w2_ref[...], h.astype(jnp.bfloat16),
                preferred_element_type=jnp.float32) + b2_ref[...]
    )
    # layer 3: [out_rows, 128] @ [128, TB] -> [out_rows, TB]  (mean rows | value row | 0 pad)
    outT_ref[...] = (
        jnp.dot(w3_ref[...], h.astype(jnp.bfloat16),
                preferred_element_type=jnp.float32) + b3_ref[...]
    )


# ---------------------------------------------------------------------------
# Wrapper
# ---------------------------------------------------------------------------

def _choose_batch_tile(B):
    """Lane-axis (batch) tile: large to amortize per-step overhead (~0.35 us), but
    >= 2 grid steps when B >= 256 so both v7x TensorCores get work."""
    if B <= 256:
        return B                                         # single step; block == full dim is legal
    return min(2048, _round_up(pl.cdiv(B, 2), 128))      # multiple of 128 -> lane-dense blocks


def actor_critic_forward(states, fused):
    """states: [B, num_inputs] f32 -> (action_mean [B,no], action_logstd [B,no], value [B,1])."""
    B, num_inputs = states.shape
    num_outputs = fused["logstd"].shape[1]
    out_rows = fused["w3"].shape[0]                      # round_up(num_outputs + 1, 8)

    TB = _choose_batch_tile(B)
    grid = (pl.cdiv(B, TB),)                             # ragged last block handled by Pallas

    # Batch-on-lanes: feed x^T (bf16) so every matmul / store is lane-dense on the batch axis.
    states_t = states.astype(jnp.bfloat16).T             # [num_inputs, B]

    weight_bytes = (
        2 * (FUSED_H * num_inputs + FUSED_H * FUSED_H + out_rows * FUSED_H)
        + 4 * (2 * FUSED_H + out_rows)
    )
    cost = pl.CostEstimate(
        flops=2 * B * (num_inputs * FUSED_H + FUSED_H * FUSED_H + FUSED_H * out_rows),
        transcendentals=2 * FUSED_H * B,
        bytes_accessed=B * num_inputs * 2 + B * out_rows * 4 + weight_bytes,
    )

    out_t = pl.pallas_call(
        actor_critic_kernel,
        out_shape=jax.ShapeDtypeStruct((out_rows, B), jnp.float32),
        grid=grid,
        in_specs=[
            pl.BlockSpec((num_inputs, TB), lambda i: (0, i)),       # x^T tiled on batch lanes
            pl.BlockSpec((FUSED_H, num_inputs), lambda i: (0, 0)),  # fused w1 (resident, bf16)
            pl.BlockSpec((FUSED_H, 1), lambda i: (0, 0)),           # fused b1 (f32)
            pl.BlockSpec((FUSED_H, FUSED_H), lambda i: (0, 0)),     # fused w2 (resident, bf16)
            pl.BlockSpec((FUSED_H, 1), lambda i: (0, 0)),           # fused b2 (f32)
            pl.BlockSpec((out_rows, FUSED_H), lambda i: (0, 0)),    # fused w3 (resident, bf16)
            pl.BlockSpec((out_rows, 1), lambda i: (0, 0)),          # fused b3 (f32)
        ],
        out_specs=pl.BlockSpec((out_rows, TB), lambda i: (0, i)),   # [8, B]: 32 B/row HBM writes
        compiler_params=pltpu.CompilerParams(
            dimension_semantics=("parallel",),           # batch axis -> both TCs on v7x
        ),
        cost_estimate=cost,
    )(states_t, fused["w1"], fused["b1"], fused["w2"], fused["b2"], fused["w3"], fused["b3"])

    action_mean = out_t[:num_outputs, :].T                          # [B, num_outputs]
    critic_value = out_t[num_outputs:num_outputs + 1, :].T          # [B, 1]
    # expand_as of the learned (1, num_outputs) parameter: a pure (lazy) broadcast.
    action_logstd = jnp.broadcast_to(fused["logstd"], action_mean.shape)
    return action_mean, action_logstd, critic_value


# ---------------------------------------------------------------------------
# Parameter construction / packing (plain JAX glue, one-time cost)
# ---------------------------------------------------------------------------

def _orthogonal(key, out_dim, in_dim, gain):
    """Deterministic orthogonal init (mirrors torch.nn.init.orthogonal_ semantics)."""
    n = max(out_dim, in_dim)
    a = jax.random.normal(key, (n, n), dtype=jnp.float32)
    q, r = jnp.linalg.qr(a)
    q = q * jnp.sign(jnp.diag(r))[None, :]
    return (gain * q[:out_dim, :in_dim]).astype(jnp.float32)


def init_params(key, num_inputs, num_outputs):
    """Raw params in torch layout: weight [out, in], bias [out]; bias_const = 0."""
    ks = jax.random.split(key, 6)

    def linear(k, in_dim, out_dim, std):
        return _orthogonal(k, out_dim, in_dim, std), jnp.zeros((out_dim,), jnp.float32)

    aw1, ab1 = linear(ks[0], num_inputs, HIDDEN, 1.0)
    aw2, ab2 = linear(ks[1], HIDDEN, HIDDEN, 1.0)
    aw3, ab3 = linear(ks[2], HIDDEN, num_outputs, 0.01)
    cw1, cb1 = linear(ks[3], num_inputs, HIDDEN, 1.0)
    cw2, cb2 = linear(ks[4], HIDDEN, HIDDEN, 1.0)
    cw3, cb3 = linear(ks[5], HIDDEN, 1, 1.0)

    return {
        "actor_w1": aw1, "actor_b1": ab1, "actor_w2": aw2, "actor_b2": ab2,
        "actor_w3": aw3, "actor_b3": ab3,
        "actor_logstd": jnp.zeros((1, num_outputs), jnp.float32),
        "critic_w1": cw1, "critic_b1": cb1, "critic_w2": cw2, "critic_b2": cb2,
        "critic_w3": cw3, "critic_b3": cb3,
    }


def pack_params(p, weight_dtype=jnp.bfloat16):
    """Fuse actor + critic into 3 transposed ("batch-on-lanes") matmuls (done once).

    Weights stay in torch layout [out, in] because the kernel computes y^T = W @ x^T.
    MXU operands are cast to `weight_dtype` (bf16 by default); biases stay f32
    (bias-add and tanh run in f32 on the VPU/EUP, accumulation is f32 on the MXU).
    """
    num_outputs = p["actor_logstd"].shape[1]
    out_rows = _round_up(num_outputs + 1, 8)             # mean rows | value row | sublane pad

    w1 = jnp.concatenate([p["actor_w1"], p["critic_w1"]], axis=0)        # [128, num_inputs]
    b1 = jnp.concatenate([p["actor_b1"], p["critic_b1"]])[:, None]       # [128, 1]

    w2 = jnp.zeros((FUSED_H, FUSED_H), jnp.float32)                      # block-diag [128, 128]
    w2 = w2.at[:HIDDEN, :HIDDEN].set(p["actor_w2"])
    w2 = w2.at[HIDDEN:, HIDDEN:].set(p["critic_w2"])
    b2 = jnp.concatenate([p["actor_b2"], p["critic_b2"]])[:, None]       # [128, 1]

    w3 = jnp.zeros((out_rows, FUSED_H), jnp.float32)                     # [8, 128]
    w3 = w3.at[:num_outputs, :HIDDEN].set(p["actor_w3"])
    w3 = w3.at[num_outputs:num_outputs + 1, HIDDEN:].set(p["critic_w3"])
    b3 = jnp.zeros((out_rows,), jnp.float32)
    b3 = b3.at[:num_outputs].set(p["actor_b3"])
    b3 = b3.at[num_outputs:num_outputs + 1].set(p["critic_b3"])
    b3 = b3[:, None]                                                     # [8, 1]

    return {
        "w1": w1.astype(weight_dtype), "b1": b1,
        "w2": w2.astype(weight_dtype), "b2": b2,
        "w3": w3.astype(weight_dtype), "b3": b3,
        "logstd": p["actor_logstd"],
    }


def reference_forward(states, p, weight_dtype=jnp.float32):
    """Pure-JAX/XLA reference of the PyTorch forward (unfused, raw torch-layout params)."""
    cd = weight_dtype

    def lin(x, w, b):
        return jnp.dot(x.astype(cd), w.T.astype(cd),
                       preferred_element_type=jnp.float32) + b

    h = jnp.tanh(lin(states, p["actor_w1"], p["actor_b1"]))
    h = jnp.tanh(lin(h, p["actor_w2"], p["actor_b2"]))
    mean = lin(h, p["actor_w3"], p["actor_b3"])
    logstd = jnp.broadcast_to(p["actor_logstd"], mean.shape)
    c = jnp.tanh(lin(states, p["critic_w1"], p["critic_b1"]))
    c = jnp.tanh(lin(c, p["critic_w2"], p["critic_b2"]))
    value = lin(c, p["critic_w3"], p["critic_b3"])
    return mean, logstd, value


if __name__ == "__main__":
    num_inputs, num_outputs, batch = 16, 4, 8

    key = jax.random.PRNGKey(0)
    k_params, k_states = jax.random.split(key)
    params = init_params(k_params, num_inputs, num_outputs)
    fused = pack_params(params)                          # bf16 MXU weights, f32 biases
    states = jax.random.normal(k_states, (batch, num_inputs), dtype=jnp.float32)

    fwd = jax.jit(actor_critic_forward)
    action_mean, action_logstd, critic_value = jax.block_until_ready(fwd(states, fused))

    assert action_mean.shape == (batch, num_outputs)
    assert action_logstd.shape == (batch, num_outputs)
    assert critic_value.shape == (batch, 1)

    # Tight check vs. an XLA reference using the SAME bf16 weights (isolates fusion/layout bugs).
    bm, _, bv = reference_forward(states, params, weight_dtype=jnp.bfloat16)
    assert jnp.allclose(action_mean, bm, atol=5e-3), float(jnp.abs(action_mean - bm).max())
    assert jnp.allclose(critic_value, bv, atol=5e-3), float(jnp.abs(critic_value - bv).max())

    # Loose check vs. the full-f32 reference (difference = bf16 weight/input rounding only).
    rm, rl, rv = reference_forward(states, params, weight_dtype=jnp.float32)
    assert jnp.allclose(action_mean, rm, atol=3e-2, rtol=3e-2)
    assert jnp.allclose(critic_value, rv, atol=3e-2, rtol=3e-2)
    assert jnp.array_equal(action_logstd, rl)

    print("KERNEL_OK")
</pallas_src>

<mosaic_0001>
module attributes {stable_mosaic.version = 11 : i64} {
  func.func @actor_critic_kernel(%arg0: i32, %arg1: memref<16x8xbf16, #tpu.memory_space<vmem>>, %arg2: memref<128x16xbf16, #tpu.memory_space<vmem>>, %arg3: memref<128x1xf32, #tpu.memory_space<vmem>>, %arg4: memref<128x128xbf16, #tpu.memory_space<vmem>>, %arg5: memref<128x1xf32, #tpu.memory_space<vmem>>, %arg6: memref<8x128xbf16, #tpu.memory_space<vmem>>, %arg7: memref<8x1xf32, #tpu.memory_space<vmem>>, %arg8: memref<8x8xf32, #tpu.memory_space<vmem>>) attributes {dimension_semantics = [#tpu.dimension_semantics<parallel>], iteration_bounds = array<i64: 1>, scalar_prefetch = 0 : i64, scratch_operands = 0 : i64, tpu.core_type = #tpu.core_type<tc>, window_params = [{transform_indices = @transform_0, window_bounds = array<i64: 16, 8>}, {pipeline_mode = #tpu.pipeline_mode<synchronous>, transform_indices = @transform_1, window_bounds = array<i64: 128, 16>}, {pipeline_mode = #tpu.pipeline_mode<synchronous>, transform_indices = @transform_2, window_bounds = array<i64: 128, 1>}, {pipeline_mode = #tpu.pipeline_mode<synchronous>, transform_indices = @transform_3, window_bounds = array<i64: 128, 128>}, {pipeline_mode = #tpu.pipeline_mode<synchronous>, transform_indices = @transform_4, window_bounds = array<i64: 128, 1>}, {pipeline_mode = #tpu.pipeline_mode<synchronous>, transform_indices = @transform_5, window_bounds = array<i64: 8, 128>}, {pipeline_mode = #tpu.pipeline_mode<synchronous>, transform_indices = @transform_6, window_bounds = array<i64: 8, 1>}, {transform_indices = @transform_7, window_bounds = array<i64: 8, 8>}]} {
    %c0 = arith.constant 0 : index
    %c0_0 = arith.constant 0 : index
    %0 = vector.load %arg1[%c0, %c0_0] : memref<16x8xbf16, #tpu.memory_space<vmem>>, vector<16x8xbf16>
    %c0_1 = arith.constant 0 : index
    %c0_2 = arith.constant 0 : index
    %1 = vector.load %arg2[%c0_1, %c0_2] : memref<128x16xbf16, #tpu.memory_space<vmem>>, vector<128x16xbf16>
    %cst = arith.constant dense<0.000000e+00> : vector<128x8xf32>
    %2 = tpu.matmul %1, %0, %cst {dimension_numbers = #tpu.dot_dimension_numbers<[1], [0], [0], [1], [0, 0, 1, 1], [], []>} : vector<128x16xbf16>, vector<16x8xbf16>, vector<128x8xf32> -> vector<128x8xf32>
    %c0_3 = arith.constant 0 : index
    %c0_4 = arith.constant 0 : index
    %3 = vector.load %arg3[%c0_3, %c0_4] : memref<128x1xf32, #tpu.memory_space<vmem>>, vector<128x1xf32>
    %4 = vector.broadcast %3 : vector<128x1xf32> to vector<128x8xf32>
    %5 = arith.addf %2, %4 : vector<128x8xf32>
    %6 = math.tanh %5 : vector<128x8xf32>
    %c0_5 = arith.constant 0 : index
    %c0_6 = arith.constant 0 : index
    %7 = vector.load %arg4[%c0_5, %c0_6] : memref<128x128xbf16, #tpu.memory_space<vmem>>, vector<128x128xbf16>
    %8 = arith.truncf %6 : vector<128x8xf32> to vector<128x8xbf16>
    %cst_7 = arith.constant dense<0.000000e+00> : vector<128x8xf32>
    %9 = tpu.matmul %7, %8, %cst_7 {dimension_numbers = #tpu.dot_dimension_numbers<[1], [0], [0], [1], [0, 0, 1, 1], [], []>} : vector<128x128xbf16>, vector<128x8xbf16>, vector<128x8xf32> -> vector<128x8xf32>
    %c0_8 = arith.constant 0 : index
    %c0_9 = arith.constant 0 : index
    %10 = vector.load %arg5[%c0_8, %c0_9] : memref<128x1xf32, #tpu.memory_space<vmem>>, vector<128x1xf32>
    %11 = vector.broadcast %10 : vector<128x1xf32> to vector<128x8xf32>
    %12 = arith.addf %9, %11 : vector<128x8xf32>
    %13 = math.tanh %12 : vector<128x8xf32>
    %c0_10 = arith.constant 0 : index
    %c0_11 = arith.constant 0 : index
    %14 = vector.load %arg6[%c0_10, %c0_11] : memref<8x128xbf16, #tpu.memory_space<vmem>>, vector<8x128xbf16>
    %15 = arith.truncf %13 : vector<128x8xf32> to vector<128x8xbf16>
    %cst_12 = arith.constant dense<0.000000e+00> : vector<8x8xf32>
    %16 = tpu.matmul %14, %15, %cst_12 {dimension_numbers = #tpu.dot_dimension_numbers<[1], [0], [0], [1], [0, 0, 1, 1], [], []>} : vector<8x128xbf16>, vector<128x8xbf16>, vector<8x8xf32> -> vector<8x8xf32>
    %c0_13 = arith.constant 0 : index
    %c0_14 = arith.constant 0 : index
    %17 = vector.load %arg7[%c0_13, %c0_14] : memref<8x1xf32, #tpu.memory_space<vmem>>, vector<8x1xf32>
    %18 = vector.broadcast %17 : vector<8x1xf32> to vector<8x8xf32>
    %19 = arith.addf %16, %18 : vector<8x8xf32>
    %c0_15 = arith.constant 0 : index
    %c0_16 = arith.constant 0 : index
    %20 = vector.load %arg8[%c0_15, %c0_16] : memref<8x8xf32, #tpu.memory_space<vmem>>, vector<8x8xf32>
    tpu.vector_store %arg8[%c0_15, %c0_16], %19 {strides = array<i32>} : memref<8x8xf32, #tpu.memory_space<vmem>>, vector<8x8xf32>,
    return
  }
  func.func @transform_0(%arg0: i32) -> (i32, i32) {
    %c0_i32 = arith.constant 0 : i32
    %c0_i32_0 = arith.constant 0 : i32
    return %c0_i32, %arg0 : i32, i32
  }
  func.func @transform_1(%arg0: i32) -> (i32, i32) {
    %c0_i32 = arith.constant 0 : i32
    %c0_i32_0 = arith.constant 0 : i32
    %c0_i32_1 = arith.constant 0 : i32
    return %c0_i32, %c0_i32_0 : i32, i32
  }
  func.func @transform_2(%arg0: i32) -> (i32, i32) {
    %c0_i32 = arith.constant 0 : i32
    %c0_i32_0 = arith.constant 0 : i32
    %c0_i32_1 = arith.constant 0 : i32
    return %c0_i32, %c0_i32_0 : i32, i32
  }
  func.func @transform_3(%arg0: i32) -> (i32, i32) {
    %c0_i32 = arith.constant 0 : i32
    %c0_i32_0 = arith.constant 0 : i32
    %c0_i32_1 = arith.constant 0 : i32
    return %c0_i32, %c0_i32_0 : i32, i32
  }
  func.func @transform_4(%arg0: i32) -> (i32, i32) {
    %c0_i32 = arith.constant 0 : i32
    %c0_i32_0 = arith.constant 0 : i32
    %c0_i32_1 = arith.constant 0 : i32
    return %c0_i32, %c0_i32_0 : i32, i32
  }
  func.func @transform_5(%arg0: i32) -> (i32, i32) {
    %c0_i32 = arith.constant 0 : i32
    %c0_i32_0 = arith.constant 0 : i32
    %c0_i32_1 = arith.constant 0 : i32
    return %c0_i32, %c0_i32_0 : i32, i32
  }
  func.func @transform_6(%arg0: i32) -> (i32, i32) {
    %c0_i32 = arith.constant 0 : i32
    %c0_i32_0 = arith.constant 0 : i32
    %c0_i32_1 = arith.constant 0 : i32
    return %c0_i32, %c0_i32_0 : i32, i32
  }
  func.func @transform_7(%arg0: i32) -> (i32, i32) {
    %c0_i32 = arith.constant 0 : i32
    %c0_i32_0 = arith.constant 0 : i32
    return %c0_i32, %arg0 : i32, i32
  }
}

</mosaic_0001>

<llo_original>
// kernel: actor_critic_forward.1
$region0: #{actor_critic_forward.1}
  #allocation0 [shape = 'u32[]', space=smem, size = 0x4, offset = 0x4, fixed_abs, tag = 'smem constant byte address 0x4 - core index']
  #allocation1 [shape = 'u32[144,128]{1,0:T(1,128)}', space=vmem, size = 0x12000, scoped, tag = 'internal scratch']
  %s0 = inlined_call_operand.vmem [shape: bf16[16,8], index: 0, kind: input, shape index: {}]
  %s1 = inlined_call_operand.vmem [shape: bf16[128,16], index: 1, kind: input, shape index: {}]
  %s2 = inlined_call_operand.vmem [shape: f32[128,1], index: 2, kind: input, shape index: {}]
  %s3 = inlined_call_operand.vmem [shape: bf16[128,128], index: 3, kind: input, shape index: {}]
  %s4 = inlined_call_operand.vmem [shape: f32[128,1], index: 4, kind: input, shape index: {}]
  %s5 = inlined_call_operand.vmem [shape: bf16[8,128], index: 5, kind: input, shape index: {}]
  %s6 = inlined_call_operand.vmem [shape: f32[8,1], index: 6, kind: input, shape index: {}]
  %s7 = inlined_call_operand.vmem [shape: f32[8,8], index: 7, kind: output, shape index: {}]
  %s8 = sld [smem:[#allocation0]]
  $region38: #{actor_critic_forward.1} parent=0
    _
  %s10 = ssub.s32 1, %s8
  %s11 = scalar_select 0, %s10, %s8
  // Predicated region
  $region2: #{actor_critic_forward.1} parent=0 // pred_check
    _
  $region3: #{actor_critic_forward.1} parent=0 // pred_check_branch
    %13 = sbr.rel (0) target = $region5
  $region4: #{actor_critic_forward.1} parent=0 // pred_region
    _
  $region5: #{actor_critic_forward.1} parent=0 // pred_fallthru
    _
  // Predicated region
  $region6: #{actor_critic_forward.1} parent=0 // pred_check
    _
  $region7: #{actor_critic_forward.1} parent=0 // pred_check_branch
    %15 = sbr.rel (0) target = $region9
  $region8: #{actor_critic_forward.1} parent=0 // pred_region
    _
  $region9: #{actor_critic_forward.1} parent=0 // pred_fallthru
    _
  // Predicated region
  $region10: #{actor_critic_forward.1} parent=0 // pred_check
    _
  $region11: #{actor_critic_forward.1} parent=0 // pred_check_branch
    %17 = sbr.rel (0) target = $region13
  $region12: #{actor_critic_forward.1} parent=0 // pred_region
    _
  $region13: #{actor_critic_forward.1} parent=0 // pred_fallthru
    _
  // Predicated region
  $region14: #{actor_critic_forward.1} parent=0 // pred_check
    _
  $region15: #{actor_critic_forward.1} parent=0 // pred_check_branch
    %19 = sbr.rel (0) target = $region17
  $region16: #{actor_critic_forward.1} parent=0 // pred_region
    _
  $region17: #{actor_critic_forward.1} parent=0 // pred_fallthru
    _
  // Predicated region
  $region18: #{actor_critic_forward.1} parent=0 // pred_check
    _
  $region19: #{actor_critic_forward.1} parent=0 // pred_check_branch
    %21 = sbr.rel (0) target = $region21
  $region20: #{actor_critic_forward.1} parent=0 // pred_region
    _
  $region21: #{actor_critic_forward.1} parent=0 // pred_fallthru
    _
  // Predicated region
  $region22: #{actor_critic_forward.1} parent=0 // pred_check
    _
  $region23: #{actor_critic_forward.1} parent=0 // pred_check_branch
    %23 = sbr.rel (0) target = $region25
  $region24: #{actor_critic_forward.1} parent=0 // pred_region
    _
  $region25: #{actor_critic_forward.1} parent=0 // pred_fallthru
    _
  // Predicated region
  $region26: #{actor_critic_forward.1} parent=0 // pred_check
    _
  $region27: #{actor_critic_forward.1} parent=0 // pred_check_branch
    %25 = sbr.rel (0) target = $region29
  $region28: #{actor_critic_forward.1} parent=0 // pred_region
    _
  $region29: #{actor_critic_forward.1} parent=0 // pred_fallthru
    _
  %v27 = vld [vmem:[%s0] sm:$0xf]
  %v28 = vld [vmem:[%s0 + $0x4] sm:$0xf]
  %v29 = vld [vmem:[%s1] sm:$0xf]
  %v30 = vld [vmem:[%s1 + $0x4] sm:$0xf]
  %v31 = vld [vmem:[%s1 + $0x8] sm:$0xf]
  %v32 = vld [vmem:[%s1 + $0xc] sm:$0xf]
  %v33 = vld [vmem:[%s1 + $0x10] sm:$0xf]
  %v34 = vld [vmem:[%s1 + $0x14] sm:$0xf]
  %v35 = vld [vmem:[%s1 + $0x18] sm:$0xf]
  %v36 = vld [vmem:[%s1 + $0x1c] sm:$0xf]
  %v37 = vld [vmem:[%s1 + $0x20] sm:$0xf]
  %v38 = vld [vmem:[%s1 + $0x24] sm:$0xf]
  %v39 = vld [vmem:[%s1 + $0x28] sm:$0xf]
  %v40 = vld [vmem:[%s1 + $0x2c] sm:$0xf]
  %v41 = vld [vmem:[%s1 + $0x30] sm:$0xf]
  %v42 = vld [vmem:[%s1 + $0x34] sm:$0xf]
  %v43 = vld [vmem:[%s1 + $0x38] sm:$0xf]
  %v44 = vld [vmem:[%s1 + $0x3c] sm:$0xf]
  %v45 = vld [vmem:[%s2] sm:$0xff]
  %v46 = vld [vmem:[%s2 + $0x8] sm:$0xff]
  %v47 = vld [vmem:[%s2 + $0x10] sm:$0xff]
  %v48 = vld [vmem:[%s2 + $0x18] sm:$0xff]
  %v49 = vld [vmem:[%s2 + $0x20] sm:$0xff]
  %v50 = vld [vmem:[%s2 + $0x28] sm:$0xff]
  %v51 = vld [vmem:[%s2 + $0x30] sm:$0xff]
  %v52 = vld [vmem:[%s2 + $0x38] sm:$0xff]
  %v53 = vld [vmem:[%s2 + $0x40] sm:$0xff]
  %v54 = vld [vmem:[%s2 + $0x48] sm:$0xff]
  %v55 = vld [vmem:[%s2 + $0x50] sm:$0xff]
  %v56 = vld [vmem:[%s2 + $0x58] sm:$0xff]
  %v57 = vld [vmem:[%s2 + $0x60] sm:$0xff]
  %v58 = vld [vmem:[%s2 + $0x68] sm:$0xff]
  %v59 = vld [vmem:[%s2 + $0x70] sm:$0xff]
  %v60 = vld [vmem:[%s2 + $0x78] sm:$0xff]
  %62 = vset.pattern.permute.xlu0 0
  %63 = vperm.xlu0 %62, %v45
  %v64 = vpop.permute.xlu0 %63
  %67 = vset.pattern.permute.xlu0 0
  %68 = vperm.xlu0 %67, %v46
  %v69 = vpop.permute.xlu0 %68
  %72 = vset.pattern.permute.xlu0 0
  %73 = vperm.xlu0 %72, %v47
  %v74 = vpop.permute.xlu0 %73
  %77 = vset.pattern.permute.xlu0 0
  %78 = vperm.xlu0 %77, %v48
  %v79 = vpop.permute.xlu0 %78
  %82 = vset.pattern.permute.xlu0 0
  %83 = vperm.xlu0 %82, %v49
  %v84 = vpop.permute.xlu0 %83
  %87 = vset.pattern.permute.xlu0 0
  %88 = vperm.xlu0 %87, %v50
  %v89 = vpop.permute.xlu0 %88
  %92 = vset.pattern.permute.xlu0 0
  %93 = vperm.xlu0 %92, %v51
  %v94 = vpop.permute.xlu0 %93
  %97 = vset.pattern.permute.xlu0 0
  %98 = vperm.xlu0 %97, %v52
  %v99 = vpop.permute.xlu0 %98
  %102 = vset.pattern.permute.xlu0 0
  %103 = vperm.xlu0 %102, %v53
  %v104 = vpop.permute.xlu0 %103
  %107 = vset.pattern.permute.xlu0 0
  %108 = vperm.xlu0 %107, %v54
  %v109 = vpop.permute.xlu0 %108
  %112 = vset.pattern.permute.xlu0 0
  %113 = vperm.xlu0 %112, %v55
  %v114 = vpop.permute.xlu0 %113
  %117 = vset.pattern.permute.xlu0 0
  %118 = vperm.xlu0 %117, %v56
  %v119 = vpop.permute.xlu0 %118
  %122 = vset.pattern.permute.xlu0 0
  %123 = vperm.xlu0 %122, %v57
  %v124 = vpop.permute.xlu0 %123
  %127 = vset.pattern.permute.xlu0 0
  %128 = vperm.xlu0 %127, %v58
  %v129 = vpop.permute.xlu0 %128
  %132 = vset.pattern.permute.xlu0 0
  %133 = vperm.xlu0 %132, %v59
  %v134 = vpop.permute.xlu0 %133
  %137 = vset.pattern.permute.xlu0 0
  %138 = vperm.xlu0 %137, %v60
  %v139 = vpop.permute.xlu0 %138
  %v157 = vunpack.c.l.b16 %v29
  %v158 = vunpack.c.l.b16 %v30
  %v159 = vunpack.c.l.b16 %v31
  %v160 = vunpack.c.l.b16 %v32
  %v161 = vunpack.c.l.b16 %v33
  %v162 = vunpack.c.l.b16 %v34
  %v163 = vunpack.c.l.b16 %v35
  %v164 = vunpack.c.l.b16 %v36
  %v165 = vunpack.c.l.b16 %v37
  %v166 = vunpack.c.l.b16 %v38
  %v167 = vunpack.c.l.b16 %v39
  %v168 = vunpack.c.l.b16 %v40
  %v169 = vunpack.c.l.b16 %v41
  %v170 = vunpack.c.l.b16 %v42
  %v171 = vunpack.c.l.b16 %v43
  %v172 = vunpack.c.l.b16 %v44
  %v173 = vpack.c.b16 %v158, %v157
  %v174 = vpack.c.b16 %v160, %v159
  %v175 = vpack.c.b16 %v162, %v161
  %v176 = vpack.c.b16 %v164, %v163
  %v177 = vpack.c.b16 %v166, %v165
  %v178 = vpack.c.b16 %v168, %v167
  %v179 = vpack.c.b16 %v170, %v169
  %v180 = vpack.c.b16 %v172, %v171
  %v183 = vunpack.c.l.b16 %v27
  %v184 = vunpack.c.l.b16 %v28
  %v185 = vpack.c.b16 %v184, %v183
  %vm187 = vcmask 130048
  %v189 = vsel %vm187, %v173, 0
  %v192 = vsel %vm187, %v174, 0
  %v195 = vsel %vm187, %v175, 0
  %v198 = vsel %vm187, %v176, 0
  %v201 = vsel %vm187, %v177, 0
  %v204 = vsel %vm187, %v178, 0
  %v207 = vsel %vm187, %v179, 0
  %v210 = vsel %vm187, %v180, 0
  %212 = vmatprep.subr.bf16.mxu0 0
  %213 = vmatpush1.bf16.msra.mxu0 %v185
  %214 = vmatprep.subr.bf16.mxu0 0
  %215 = vmatpush1.bf16.msra.mxu0 0
  %216 = vmatprep.subr.bf16.mxu0 0
  %217 = vmatpush1.bf16.msra.mxu0 0
  %218 = vmatprep.subr.bf16.mxu0 0
  %219 = vmatpush1.bf16.msra.mxu0 0
  %220 = vmatprep.subr.bf16.mxu0 0
  %221 = vmatpush1.bf16.msra.mxu0 0
  %222 = vmatprep.subr.bf16.mxu0 0
  %223 = vmatpush1.bf16.msra.mxu0 0
  %224 = vmatprep.subr.bf16.mxu0 0
  %225 = vmatpush1.bf16.msra.mxu0 0
  %226 = vmatprep.subr.bf16.mxu0 0
  %227 = vmatpush1.bf16.msra.mxu0 0
  %228 = vmatprep.subr.bf16.mxu0 0
  %229 = vmatpush1.bf16.msra.mxu0 0
  %230 = vmatprep.subr.bf16.mxu0 0
  %231 = vmatpush1.bf16.msra.mxu0 0
  %232 = vmatprep.subr.bf16.mxu0 0
  %233 = vmatpush1.bf16.msra.mxu0 0
  %234 = vmatprep.subr.bf16.mxu0 0
  %235 = vmatpush1.bf16.msra.mxu0 0
  %236 = vmatprep.subr.bf16.mxu0 0
  %237 = vmatpush1.bf16.msra.mxu0 0
  %238 = vmatprep.subr.bf16.mxu0 0
  %239 = vmatpush1.bf16.msra.mxu0 0
  %240 = vmatprep.subr.bf16.mxu0 0
  %241 = vmatpush1.bf16.msra.mxu0 0
  %242 = vmatprep.subr.bf16.mxu0 0
  %243 = vmatpush1.bf16.msra.mxu0 0
  %244 = vmatprep.mubr.bf16.mxu0 0
  %245 = vmatmul.mubr.bf16.gmra.mrb[0].mxu0 %v189
  %v246 = vpop.f32.mrb[0].mxu0
  %v247 = vadd.f32 %v64, %v246
  %v248 = vpop.f32.mrb[0].mxu0
  %v249 = vpop.f32.mrb[0].mxu0
  %v250 = vadd.f32 %v69, %v249
  %v251 = vpop.f32.mrb[0].mxu0
  %252 = vmatprep.mubr.bf16.mxu0 0
  %253 = vmatmul.mubr.bf16.gmra.mrb[0].mxu0 %v192
  %v254 = vpop.f32.mrb[0].mxu0
  %v255 = vadd.f32 %v74, %v254
  %v256 = vpop.f32.mrb[0].mxu0
  %v257 = vpop.f32.mrb[0].mxu0
  %v258 = vadd.f32 %v79, %v257
  %v259 = vpop.f32.mrb[0].mxu0
  %260 = vmatprep.mubr.bf16.mxu0 0
  %261 = vmatmul.mubr.bf16.gmra.mrb[0].mxu0 %v195
  %v262 = vpop.f32.mrb[0].mxu0
  %v263 = vadd.f32 %v84, %v262
  %v264 = vpop.f32.mrb[0].mxu0
  %v265 = vpop.f32.mrb[0].mxu0
  %v266 = vadd.f32 %v89, %v265
  %v267 = vpop.f32.mrb[0].mxu0
  %268 = vmatprep.mubr.bf16.mxu0 0
  %269 = vmatmul.mubr.bf16.gmra.mrb[0].mxu0 %v198
  %v270 = vpop.f32.mrb[0].mxu0
  %v271 = vadd.f32 %v94, %v270
  %v272 = vpop.f32.mrb[0].mxu0
  %v273 = vpop.f32.mrb[0].mxu0
  %v274 = vadd.f32 %v99, %v273
  %v275 = vpop.f32.mrb[0].mxu0
  %276 = vmatprep.mubr.bf16.mxu0 0
  %277 = vmatmul.mubr.bf16.gmra.mrb[0].mxu0 %v201
  %v278 = vpop.f32.mrb[0].mxu0
  %v279 = vadd.f32 %v104, %v278
  %v280 = vpop.f32.mrb[0].mxu0
  %v281 = vpop.f32.mrb[0].mxu0
  %v282 = vadd.f32 %v109, %v281
  %v283 = vpop.f32.mrb[0].mxu0
  %284 = vmatprep.mubr.bf16.mxu0 0
  %285 = vmatmul.mubr.bf16.gmra.mrb[0].mxu0 %v204
  %v286 = vpop.f32.mrb[0].mxu0
  %v287 = vadd.f32 %v114, %v286
  %v288 = vpop.f32.mrb[0].mxu0
  %v289 = vpop.f32.mrb[0].mxu0
  %v290 = vadd.f32 %v119, %v289
  %v291 = vpop.f32.mrb[0].mxu0
  %292 = vmatprep.mubr.bf16.mxu0 0
  %293 = vmatmul.mubr.bf16.gmra.mrb[0].mxu0 %v207
  %v294 = vpop.f32.mrb[0].mxu0
  %v295 = vadd.f32 %v124, %v294
  %v296 = vpop.f32.mrb[0].mxu0
  %v297 = vpop.f32.mrb[0].mxu0
  %v298 = vadd.f32 %v129, %v297
  %v299 = vpop.f32.mrb[0].mxu0
  %300 = vmatprep.mubr.bf16.mxu0 0
  %301 = vmatmul.mubr.bf16.gmra.mrb[0].mxu0 %v210
  %v302 = vpop.f32.mrb[0].mxu0
  %v303 = vadd.f32 %v134, %v302
  %v304 = vpop.f32.mrb[0].mxu0
  %v305 = vpop.f32.mrb[0].mxu0
  %v306 = vadd.f32 %v139, %v305
  %v307 = vpop.f32.mrb[0].mxu0
  %308 = vdwg.mxu0
  %v309 = vtanh.pop %v247
  %v310 = vtanh.pop %v250
  %v311 = vtanh.pop %v255
  %v312 = vtanh.pop %v258
  %v313 = vtanh.pop %v263
  %v314 = vtanh.pop %v266
  %v315 = vtanh.pop %v271
  %v316 = vtanh.pop %v274
  %v317 = vtanh.pop %v279
  %v318 = vtanh.pop %v282
  %v319 = vtanh.pop %v287
  %v320 = vtanh.pop %v290
  %v321 = vtanh.pop %v295
  %v322 = vtanh.pop %v298
  %v323 = vtanh.pop %v303
  %v324 = vtanh.pop %v306
  %v325 = vld [vmem:[%s3] sm:$0xf]
  %v326 = vld [vmem:[%s3 + $0x4] sm:$0xf]
  %v327 = vld [vmem:[%s3 + $0x8] sm:$0xf]
  %v328 = vld [vmem:[%s3 + $0xc] sm:$0xf]
  %v329 = vld [vmem:[%s3 + $0x10] sm:$0xf]
  %v330 = vld [vmem:[%s3 + $0x14] sm:$0xf]
  %v331 = vld [vmem:[%s3 + $0x18] sm:$0xf]
  %v332 = vld [vmem:[%s3 + $0x1c] sm:$0xf]
  %v333 = vld [vmem:[%s3 + $0x20] sm:$0xf]
  %v334 = vld [vmem:[%s3 + $0x24] sm:$0xf]
  %v335 = vld [vmem:[%s3 + $0x28] sm:$0xf]
  %v336 = vld [vmem:[%s3 + $0x2c] sm:$0xf]
  %v337 = vld [vmem:[%s3 + $0x30] sm:$0xf]
  %v338 = vld [vmem:[%s3 + $0x34] sm:$0xf]
  %v339 = vld [vmem:[%s3 + $0x38] sm:$0xf]
  %v340 = vld [vmem:[%s3 + $0x3c] sm:$0xf]
  %v341 = vpack.c.bf16 %v310, %v309
  %v342 = vpack.c.bf16 %v312, %v311
  %v343 = vpack.c.bf16 %v314, %v313
  %v344 = vpack.c.bf16 %v316, %v315
  %v345 = vpack.c.bf16 %v318, %v317
  %v346 = vpack.c.bf16 %v320, %v319
  %v347 = vpack.c.bf16 %v322, %v321
  %v348 = vpack.c.bf16 %v324, %v323
  %v349 = vld [vmem:[%s4] sm:$0xff]
  %v350 = vld [vmem:[%s4 + $0x8] sm:$0xff]
  %v351 = vld [vmem:[%s4 + $0x10] sm:$0xff]
  %v352 = vld [vmem:[%s4 + $0x18] sm:$0xff]
  %v353 = vld [vmem:[%s4 + $0x20] sm:$0xff]
  %v354 = vld [vmem:[%s4 + $0x28] sm:$0xff]
  %v355 = vld [vmem:[%s4 + $0x30] sm:$0xff]
  %v356 = vld [vmem:[%s4 + $0x38] sm:$0xff]
  %v357 = vld [vmem:[%s4 + $0x40] sm:$0xff]
  %v358 = vld [vmem:[%s4 + $0x48] sm:$0xff]
  %v359 = vld [vmem:[%s4 + $0x50] sm:$0xff]
  %v360 = vld [vmem:[%s4 + $0x58] sm:$0xff]
  %v361 = vld [vmem:[%s4 + $0x60] sm:$0xff]
  %v362 = vld [vmem:[%s4 + $0x68] sm:$0xff]
  %v363 = vld [vmem:[%s4 + $0x70] sm:$0xff]
  %v364 = vld [vmem:[%s4 + $0x78] sm:$0xff]
  %366 = vset.pattern.permute.xlu0 0
  %367 = vperm.xlu0 %366, %v349
  %v368 = vpop.permute.xlu0 %367
  %371 = vset.pattern.permute.xlu0 0
  %372 = vperm.xlu0 %371, %v350
  %v373 = vpop.permute.xlu0 %372
  %376 = vset.pattern.permute.xlu0 0
  %377 = vperm.xlu0 %376, %v351
  %v378 = vpop.permute.xlu0 %377
  %381 = vset.pattern.permute.xlu0 0
  %382 = vperm.xlu0 %381, %v352
  %v383 = vpop.permute.xlu0 %382
  %386 = vset.pattern.permute.xlu0 0
  %387 = vperm.xlu0 %386, %v353
  %v388 = vpop.permute.xlu0 %387
  %391 = vset.pattern.permute.xlu0 0
  %392 = vperm.xlu0 %391, %v354
  %v393 = vpop.permute.xlu0 %392
  %396 = vset.pattern.permute.xlu0 0
  %397 = vperm.xlu0 %396, %v355
  %v398 = vpop.permute.xlu0 %397
  %401 = vset.pattern.permute.xlu0 0
  %402 = vperm.xlu0 %401, %v356
  %v403 = vpop.permute.xlu0 %402
  %406 = vset.pattern.permute.xlu0 0
  %407 = vperm.xlu0 %406, %v357
  %v408 = vpop.permute.xlu0 %407
  %411 = vset.pattern.permute.xlu0 0
  %412 = vperm.xlu0 %411, %v358
  %v413 = vpop.permute.xlu0 %412
  %416 = vset.pattern.permute.xlu0 0
  %417 = vperm.xlu0 %416, %v359
  %v418 = vpop.permute.xlu0 %417
  %421 = vset.pattern.permute.xlu0 0
  %422 = vperm.xlu0 %421, %v360
  %v423 = vpop.permute.xlu0 %422
  %426 = vset.pattern.permute.xlu0 0
  %427 = vperm.xlu0 %426, %v361
  %v428 = vpop.permute.xlu0 %427
  %431 = vset.pattern.permute.xlu0 0
  %432 = vperm.xlu0 %431, %v362
  %v433 = vpop.permute.xlu0 %432
  %436 = vset.pattern.permute.xlu0 0
  %437 = vperm.xlu0 %436, %v363
  %v438 = vpop.permute.xlu0 %437
  %441 = vset.pattern.permute.xlu0 0
  %442 = vperm.xlu0 %441, %v364
  %v443 = vpop.permute.xlu0 %442
  %v461 = vunpack.c.l.b16 %v325
  %v462 = vunpack.c.l.b16 %v326
  %v463 = vunpack.c.l.b16 %v327
  %v464 = vunpack.c.l.b16 %v328
  %v465 = vunpack.c.l.b16 %v329
  %v466 = vunpack.c.l.b16 %v330
  %v467 = vunpack.c.l.b16 %v331
  %v468 = vunpack.c.l.b16 %v332
  %v469 = vunpack.c.l.b16 %v333
  %v470 = vunpack.c.l.b16 %v334
  %v471 = vunpack.c.l.b16 %v335
  %v472 = vunpack.c.l.b16 %v336
  %v473 = vunpack.c.l.b16 %v337
  %v474 = vunpack.c.l.b16 %v338
  %v475 = vunpack.c.l.b16 %v339
  %v476 = vunpack.c.l.b16 %v340
  %v477 = vpack.c.b16 %v462, %v461
  %v478 = vpack.c.b16 %v464, %v463
  %v479 = vpack.c.b16 %v466, %v465
  %v480 = vpack.c.b16 %v468, %v467
  %v481 = vpack.c.b16 %v470, %v469
  %v482 = vpack.c.b16 %v472, %v471
  %v483 = vpack.c.b16 %v474, %v473
  %v484 = vpack.c.b16 %v476, %v475
  %493 = vmatprep.subr.bf16.mxu0 0
  %494 = vmatpush1.bf16.msra.mxu0 %v341
  %495 = vmatprep.subr.bf16.mxu0 0
  %496 = vmatpush1.bf16.msra.mxu0 %v342
  %497 = vmatprep.subr.bf16.mxu0 0
  %498 = vmatpush1.bf16.msra.mxu0 %v343
  %499 = vmatprep.subr.bf16.mxu0 0
  %500 = vmatpush1.bf16.msra.mxu0 %v344
  %501 = vmatprep.subr.bf16.mxu0 0
  %502 = vmatpush1.bf16.msra.mxu0 %v345
  %503 = vmatprep.subr.bf16.mxu0 0
  %504 = vmatpush1.bf16.msra.mxu0 %v346
  %505 = vmatprep.subr.bf16.mxu0 0
  %506 = vmatpush1.bf16.msra.mxu0 %v347
  %507 = vmatprep.subr.bf16.mxu0 0
  %508 = vmatpush1.bf16.msra.mxu0 %v348
  %509 = vmatprep.subr.bf16.mxu0 0
  %510 = vmatpush1.bf16.msra.mxu0 0
  %511 = vmatprep.subr.bf16.mxu0 0
  %512 = vmatpush1.bf16.msra.mxu0 0
  %513 = vmatprep.subr.bf16.mxu0 0
  %514 = vmatpush1.bf16.msra.mxu0 0
  %515 = vmatprep.subr.bf16.mxu0 0
  %516 = vmatpush1.bf16.msra.mxu0 0
  %517 = vmatprep.subr.bf16.mxu0 0
  %518 = vmatpush1.bf16.msra.mxu0 0
  %519 = vmatprep.subr.bf16.mxu0 0
  %520 = vmatpush1.bf16.msra.mxu0 0
  %521 = vmatprep.subr.bf16.mxu0 0
  %522 = vmatpush1.bf16.msra.mxu0 0
  %523 = vmatprep.subr.bf16.mxu0 0
  %524 = vmatpush1.bf16.msra.mxu0 0
  %525 = vmatprep.mubr.bf16.mxu0 0
  %526 = vmatmul.mubr.bf16.gmra.mrb[0].mxu0 %v477
  %v527 = vpop.f32.mrb[0].mxu0
  %v528 = vadd.f32 %v368, %v527
  %v529 = vpop.f32.mrb[0].mxu0
  %v530 = vpop.f32.mrb[0].mxu0
  %v531 = vadd.f32 %v373, %v530
  %v532 = vpop.f32.mrb[0].mxu0
  %533 = vmatprep.mubr.bf16.mxu0 0
  %534 = vmatmul.mubr.bf16.gmra.mrb[0].mxu0 %v478
  %v535 = vpop.f32.mrb[0].mxu0
  %v536 = vadd.f32 %v378, %v535
  %v537 = vpop.f32.mrb[0].mxu0
  %v538 = vpop.f32.mrb[0].mxu0
  %v539 = vadd.f32 %v383, %v538
  %v540 = vpop.f32.mrb[0].mxu0
  %541 = vmatprep.mubr.bf16.mxu0 0
  %542 = vmatmul.mubr.bf16.gmra.mrb[0].mxu0 %v479
  %v543 = vpop.f32.mrb[0].mxu0
  %v544 = vadd.f32 %v388, %v543
  %v545 = vpop.f32.mrb[0].mxu0
  %v546 = vpop.f32.mrb[0].mxu0
  %v547 = vadd.f32 %v393, %v546
  %v548 = vpop.f32.mrb[0].mxu0
  %549 = vmatprep.mubr.bf16.mxu0 0
  %550 = vmatmul.mubr.bf16.gmra.mrb[0].mxu0 %v480
  %v551 = vpop.f32.mrb[0].mxu0
  %v552 = vadd.f32 %v398, %v551
  %v553 = vpop.f32.mrb[0].mxu0
  %v554 = vpop.f32.mrb[0].mxu0
  %v555 = vadd.f32 %v403, %v554
  %v556 = vpop.f32.mrb[0].mxu0
  %557 = vmatprep.mubr.bf16.mxu0 0
  %558 = vmatmul.mubr.bf16.gmra.mrb[0].mxu0 %v481
  %v559 = vpop.f32.mrb[0].mxu0
  %v560 = vadd.f32 %v408, %v559
  %v561 = vpop.f32.mrb[0].mxu0
  %v562 = vpop.f32.mrb[0].mxu0
  %v563 = vadd.f32 %v413, %v562
  %v564 = vpop.f32.mrb[0].mxu0
  %565 = vmatprep.mubr.bf16.mxu0 0
  %566 = vmatmul.mubr.bf16.gmra.mrb[0].mxu0 %v482
  %v567 = vpop.f32.mrb[0].mxu0
  %v568 = vadd.f32 %v418, %v567
  %v569 = vpop.f32.mrb[0].mxu0
  %v570 = vpop.f32.mrb[0].mxu0
  %v571 = vadd.f32 %v423, %v570
  %v572 = vpop.f32.mrb[0].mxu0
  %573 = vmatprep.mubr.bf16.mxu0 0
  %574 = vmatmul.mubr.bf16.gmra.mrb[0].mxu0 %v483
  %v575 = vpop.f32.mrb[0].mxu0
  %v576 = vadd.f32 %v428, %v575
  %v577 = vpop.f32.mrb[0].mxu0
  %v578 = vpop.f32.mrb[0].mxu0
  %v579 = vadd.f32 %v433, %v578
  %v580 = vpop.f32.mrb[0].mxu0
  %581 = vmatprep.mubr.bf16.mxu0 0
  %582 = vmatmul.mubr.bf16.gmra.mrb[0].mxu0 %v484
  %v583 = vpop.f32.mrb[0].mxu0
  %v584 = vadd.f32 %v438, %v583
  %v585 = vpop.f32.mrb[0].mxu0
  %v586 = vpop.f32.mrb[0].mxu0
  %v587 = vadd.f32 %v443, %v586
  %v588 = vpop.f32.mrb[0].mxu0
  %589 = vdwg.mxu0
  %v590 = vtanh.pop %v528
  %v591 = vtanh.pop %v531
  %v592 = vtanh.pop %v536
  %v593 = vtanh.pop %v539
  %v594 = vtanh.pop %v544
  %v595 = vtanh.pop %v547
  %v596 = vtanh.pop %v552
  %v597 = vtanh.pop %v555
  %v598 = vtanh.pop %v560
  %v599 = vtanh.pop %v563
  %v600 = vtanh.pop %v568
  %v601 = vtanh.pop %v571
  %v602 = vtanh.pop %v576
  %v603 = vtanh.pop %v579
  %v604 = vtanh.pop %v584
  %v605 = vtanh.pop %v587
  %v606 = vld [vmem:[%s5] sm:$0xf]
  %v607 = vpack.c.bf16 %v591, %v590
  %v608 = vpack.c.bf16 %v593, %v592
  %v609 = vpack.c.bf16 %v595, %v594
  %v610 = vpack.c.bf16 %v597, %v596
  %v611 = vpack.c.bf16 %v599, %v598
  %v612 = vpack.c.bf16 %v601, %v600
  %v613 = vpack.c.bf16 %v603, %v602
  %v614 = vpack.c.bf16 %v605, %v604
  %v615 = vld [vmem:[%s6] sm:$0xff]
  %617 = vset.pattern.permute.xlu0 0
  %618 = vperm.xlu0 %617, %v615
  %v619 = vpop.permute.xlu0 %618
  %621 = vmatprep.subr.bf16.mxu0 0
  %622 = vmatpush1.bf16.msra.mxu0 %v607
  %623 = vmatprep.subr.bf16.mxu0 0
  %624 = vmatpush1.bf16.msra.mxu0 %v608
  %625 = vmatprep.subr.bf16.mxu0 0
  %626 = vmatpush1.bf16.msra.mxu0 %v609
  %627 = vmatprep.subr.bf16.mxu0 0
  %628 = vmatpush1.bf16.msra.mxu0 %v610
  %629 = vmatprep.subr.bf16.mxu0 0
  %630 = vmatpush1.bf16.msra.mxu0 %v611
  %631 = vmatprep.subr.bf16.mxu0 0
  %632 = vmatpush1.bf16.msra.mxu0 %v612
  %633 = vmatprep.subr.bf16.mxu0 0
  %634 = vmatpush1.bf16.msra.mxu0 %v613
  %635 = vmatprep.subr.bf16.mxu0 0
  %636 = vmatpush1.bf16.msra.mxu0 %v614
  %637 = vmatprep.subr.bf16.mxu0 0
  %638 = vmatpush1.bf16.msra.mxu0 0
  %639 = vmatprep.subr.bf16.mxu0 0
  %640 = vmatpush1.bf16.msra.mxu0 0
  %641 = vmatprep.subr.bf16.mxu0 0
  %642 = vmatpush1.bf16.msra.mxu0 0
  %643 = vmatprep.subr.bf16.mxu0 0
  %644 = vmatpush1.bf16.msra.mxu0 0
  %645 = vmatprep.subr.bf16.mxu0 0
  %646 = vmatpush1.bf16.msra.mxu0 0
  %647 = vmatprep.subr.bf16.mxu0 0
  %648 = vmatpush1.bf16.msra.mxu0 0
  %649 = vmatprep.subr.bf16.mxu0 0
  %650 = vmatpush1.bf16.msra.mxu0 0
  %651 = vmatprep.subr.bf16.mxu0 0
  %652 = vmatpush1.bf16.msra.mxu0 0
  %653 = vmatprep.mubr.bf16.mxu0 0
  %654 = vmatmul.mubr.bf16.gmra.mrb[0].mxu0 %v606
  %v655 = vpop.f32.mrb[0].mxu0
  %v656 = vadd.f32 %v619, %v655
  %v657 = vpop.f32.mrb[0].mxu0
  %v658 = vpop.f32.mrb[0].mxu0
  %v659 = vpop.f32.mrb[0].mxu0
  %660 = vdwg.mxu0
  %vm661 = vcmask 64512
  %662 = vst.msk [vmem:[%s7] sm:$0xff] %vm661, %v656
  // Predicated region
  $region30: #{actor_critic_forward.1} parent=0 // pred_check
    _
  $region31: #{actor_critic_forward.1} parent=0 // pred_check_branch
    %664 = sbr.rel (0) target = $region33
  $region32: #{actor_critic_forward.1} parent=0 // pred_region
    _
  $region33: #{actor_critic_forward.1} parent=0 // pred_fallthru
    _
  // Predicated region
  $region34: #{actor_critic_forward.1} parent=0 // pred_check
    _
  $region35: #{actor_critic_forward.1} parent=0 // pred_check_branch
    %666 = sbr.rel (0) target = $region37
  $region36: #{actor_critic_forward.1} parent=0 // pred_region
    _
  $region37: #{actor_critic_forward.1} parent=0 // pred_fallthru
    _

</llo_original>
